<compile_context>
chip_gen: v7x
topology: tpu7x:2x2x1
jax: 0.10.0
libtpu: 0.0.40
codegen_flags: <defaults>
</compile_context>

<pallas_src>
import functools

import jax
import jax.numpy as jnp
from jax.experimental import pallas as pl
from jax.experimental.pallas import tpu as pltpu

F_IN = 4            # fc1 in_features
H = 8               # hidden width (fc1 / fc2 out_features)
LANES = 128         # TPU lane width; batch tile granularity
PACK_ROWS = 32      # rows of the packed parameter slab (multiple of 8)
BLOCK_M_MAX = 8192  # max batch tile (lanes); multiple of 128


def _round_up(n, m):
    return ((n + m - 1) // m) * m


def pack_params(w1, b1, w2, b2, w3, b3):
    """Pack all params into one (32, 128) f32 slab (8-row aligned regions).

    Weights are given in [in_features, out_features] layout (so the reference
    math is y = x @ W + b).  The slab stores the transposed-form operands:
      rows  0: 8, cols 0:4 -> W1^T (8, 4)
      rows  8:16, cols 0:8 -> W2^T (8, 8)
      rows 16:24, col  0   -> W3   (8, 1)
      rows 24:32, col  0   -> b1   (8, 1)
      rows 24:32, col  1   -> b2   (8, 1)
      row  24,    col  2   -> b3   (scalar)
    """
    p = jnp.zeros((PACK_ROWS, LANES), jnp.float32)
    p = p.at[0:H, 0:F_IN].set(w1.astype(jnp.float32).T)
    p = p.at[8:16, 0:H].set(w2.astype(jnp.float32).T)
    p = p.at[16:24, 0:1].set(w3.astype(jnp.float32).reshape(H, 1))
    p = p.at[24:32, 0:1].set(b1.astype(jnp.float32).reshape(H, 1))
    p = p.at[24:32, 1:2].set(b2.astype(jnp.float32).reshape(H, 1))
    p = p.at[24, 2].set(b3.astype(jnp.float32).reshape(()))
    return p


def mlp_kernel(x_ref, p_ref, o_ref):
    p = p_ref[...]                       # (32, 128) parameter slab (4 vregs)
    w1t = p[0:H, 0:F_IN]                 # (8, 4)
    w2t = p[8:16, 0:H]                   # (8, 8)
    w3c = p[16:24, 0:1]                  # (8, 1)
    b1c = p[24:32, 0:1]                  # (8, 1)
    b2c = p[24:32, 1:2]                  # (8, 1)
    b3s = p[24:25, 2:3]                  # (1, 1)

    xt = x_ref[...]                      # (4, TM): features x batch (lanes)
    # fc1 -> relu : (8, TM), lane-dense
    h1 = jnp.dot(w1t, xt, preferred_element_type=jnp.float32) + b1c
    h1 = jnp.maximum(h1, 0.0)
    # fc2 -> relu : (8, TM), lane-dense
    h2 = jnp.dot(w2t, h1, preferred_element_type=jnp.float32) + b2c
    h2 = jnp.maximum(h2, 0.0)
    # fc3 (out_features == 1): VPU multiply + sublane reduce -> (1, TM)
    y = jnp.sum(h2 * w3c, axis=0, keepdims=True) + b3s
    o_ref[...] = y.astype(o_ref.dtype)


def _pallas_forward(x_t, params, block_m):
    bp = x_t.shape[1]
    grid = (bp // block_m,)
    return pl.pallas_call(
        mlp_kernel,
        out_shape=jax.ShapeDtypeStruct((1, bp), jnp.float32),
        grid=grid,
        in_specs=[
            pl.BlockSpec((F_IN, block_m), lambda i: (0, i)),
            pl.BlockSpec((PACK_ROWS, LANES), lambda i: (0, 0)),
        ],
        out_specs=pl.BlockSpec((1, block_m), lambda i: (0, i)),
        compiler_params=pltpu.CompilerParams(
            dimension_semantics=("parallel",),   # megacore sharding on v7x
            vmem_limit_bytes=32 * 1024 * 1024,   # tiny working set; safe everywhere
        ),
    )(x_t, params)


@functools.partial(jax.jit, static_argnames=("block_m",))
def _forward_jit(x, w1, b1, w2, b2, w3, b3, *, block_m):
    b = x.shape[0]
    bp = _round_up(b, block_m)
    params = pack_params(w1, b1, w2, b2, w3, b3)
    x_t = x.astype(jnp.float32).T            # (4, b): batch in lanes
    if bp != b:
        x_t = jnp.pad(x_t, ((0, 0), (0, bp - b)))
    out = _pallas_forward(x_t, params, block_m)   # (1, bp)
    return out[0, :b].reshape(b, 1)


def _choose_block_m(b):
    bp = _round_up(max(b, 1), LANES)
    # Aim for >= 2 grid tiles once there is enough work (keeps both v7x
    # TensorCores busy); bucket to powers of two * 128 to bound recompiles.
    target = _round_up((bp + 1) // 2, LANES) if bp > LANES else LANES
    bm = LANES
    while bm < target and bm < BLOCK_M_MAX:
        bm *= 2
    return bm


def regression_model_forward(x, w1, b1, w2, b2, w3, b3):
    """Forward pass of RegressionModel: relu(fc1) -> relu(fc2) -> fc3."""
    block_m = _choose_block_m(x.shape[0])
    return _forward_jit(x, w1, b1, w2, b2, w3, b3, block_m=block_m)


def init_linear_params(key, in_features, out_features):
    # Deterministic init mimicking PyTorch nn.Linear default:
    # U(-1/sqrt(in), 1/sqrt(in)) for both weight and bias.
    k_w, k_b = jax.random.split(key)
    bound = 1.0 / (in_features ** 0.5)
    # Stored as [in, out] so the reference computes x @ W directly.
    w = jax.random.uniform(k_w, (in_features, out_features), jnp.float32,
                           minval=-bound, maxval=bound)
    b = jax.random.uniform(k_b, (out_features,), jnp.float32,
                           minval=-bound, maxval=bound)
    return w, b


if __name__ == "__main__":
    key = jax.random.PRNGKey(0)
    k_x, k1, k2, k3 = jax.random.split(key, 4)

    w1, b1 = init_linear_params(k1, F_IN, H)
    w2, b2 = init_linear_params(k2, H, H)
    w3, b3 = init_linear_params(k3, H, 1)

    def ref_forward(xv):
        hp = jax.lax.Precision.HIGHEST
        h = jnp.maximum(jnp.dot(xv, w1, precision=hp) + b1, 0.0)
        h = jnp.maximum(jnp.dot(h, w2, precision=hp) + b2, 0.0)
        return jnp.dot(h, w3, precision=hp) + b3

    # batch=8: single tile.  batch=300: two tiles + padded batch columns.
    for batch in (8, 300):
        kx = jax.random.fold_in(k_x, batch)
        x = jax.random.normal(kx, (batch, F_IN), jnp.float32)
        out = jax.block_until_ready(
            regression_model_forward(x, w1, b1, w2, b2, w3, b3))
        ref = ref_forward(x)
        assert out.shape == (batch, 1)
        assert jnp.allclose(out, ref, atol=1e-4, rtol=1e-4)

    print("KERNEL_OK")
</pallas_src>

<mosaic_0001>
module attributes {stable_mosaic.version = 11 : i64} {
  func.func @mlp_kernel(%arg0: i32, %arg1: memref<4x128xf32, #tpu.memory_space<vmem>>, %arg2: memref<32x128xf32, #tpu.memory_space<vmem>>, %arg3: memref<1x128xf32, #tpu.memory_space<vmem>>) attributes {dimension_semantics = [#tpu.dimension_semantics<parallel>], iteration_bounds = array<i64: 1>, scalar_prefetch = 0 : i64, scratch_operands = 0 : i64, tpu.core_type = #tpu.core_type<tc>, window_params = [{transform_indices = @transform_0, window_bounds = array<i64: 4, 128>}, {pipeline_mode = #tpu.pipeline_mode<synchronous>, transform_indices = @transform_1, window_bounds = array<i64: 32, 128>}, {transform_indices = @transform_2, window_bounds = array<i64: 1, 128>}]} {
    %c0 = arith.constant 0 : index
    %c0_0 = arith.constant 0 : index
    %0 = vector.load %arg2[%c0, %c0_0] : memref<32x128xf32, #tpu.memory_space<vmem>>, vector<32x128xf32>
    %1 = vector.extract_strided_slice %0 {offsets = [0, 0], sizes = [8, 4], strides = [1, 1]} : vector<32x128xf32> to vector<8x4xf32>
    %2 = vector.extract_strided_slice %0 {offsets = [8, 0], sizes = [8, 8], strides = [1, 1]} : vector<32x128xf32> to vector<8x8xf32>
    %3 = vector.extract_strided_slice %0 {offsets = [16, 0], sizes = [8, 1], strides = [1, 1]} : vector<32x128xf32> to vector<8x1xf32>
    %4 = vector.extract_strided_slice %0 {offsets = [24, 0], sizes = [8, 1], strides = [1, 1]} : vector<32x128xf32> to vector<8x1xf32>
    %5 = vector.extract_strided_slice %0 {offsets = [24, 1], sizes = [8, 1], strides = [1, 1]} : vector<32x128xf32> to vector<8x1xf32>
    %6 = vector.extract_strided_slice %0 {offsets = [24, 2], sizes = [1, 1], strides = [1, 1]} : vector<32x128xf32> to vector<1x1xf32>
    %c0_1 = arith.constant 0 : index
    %c0_2 = arith.constant 0 : index
    %7 = vector.load %arg1[%c0_1, %c0_2] : memref<4x128xf32, #tpu.memory_space<vmem>>, vector<4x128xf32>
    %cst = arith.constant dense<0.000000e+00> : vector<8x128xf32>
    %8 = tpu.matmul %1, %7, %cst {dimension_numbers = #tpu.dot_dimension_numbers<[1], [0], [0], [1], [0, 0, 1, 1], [], []>} : vector<8x4xf32>, vector<4x128xf32>, vector<8x128xf32> -> vector<8x128xf32>
    %9 = vector.broadcast %4 : vector<8x1xf32> to vector<8x128xf32>
    %10 = arith.addf %8, %9 : vector<8x128xf32>
    %cst_3 = arith.constant 0.000000e+00 : f32
    %11 = vector.broadcast %cst_3 : f32 to vector<8x128xf32>
    %12 = arith.maximumf %10, %11 : vector<8x128xf32>
    %cst_4 = arith.constant dense<0.000000e+00> : vector<8x128xf32>
    %13 = tpu.matmul %2, %12, %cst_4 {dimension_numbers = #tpu.dot_dimension_numbers<[1], [0], [0], [1], [0, 0, 1, 1], [], []>} : vector<8x8xf32>, vector<8x128xf32>, vector<8x128xf32> -> vector<8x128xf32>
    %14 = vector.broadcast %5 : vector<8x1xf32> to vector<8x128xf32>
    %15 = arith.addf %13, %14 : vector<8x128xf32>
    %cst_5 = arith.constant 0.000000e+00 : f32
    %16 = vector.broadcast %cst_5 : f32 to vector<8x128xf32>
    %17 = arith.maximumf %15, %16 : vector<8x128xf32>
    %18 = vector.broadcast %3 : vector<8x1xf32> to vector<8x128xf32>
    %19 = arith.mulf %17, %18 : vector<8x128xf32>
    %cst_6 = arith.constant dense<0.000000e+00> : vector<128xf32>
    %20 = vector.multi_reduction <add>, %19, %cst_6 [0] : vector<8x128xf32> to vector<128xf32>
    %21 = vector.shape_cast %20 : vector<128xf32> to vector<1x128xf32>
    %22 = vector.broadcast %6 : vector<1x1xf32> to vector<1x128xf32>
    %23 = arith.addf %21, %22 : vector<1x128xf32>
    %c0_7 = arith.constant 0 : index
    %c0_8 = arith.constant 0 : index
    %24 = vector.load %arg3[%c0_7, %c0_8] : memref<1x128xf32, #tpu.memory_space<vmem>>, vector<1x128xf32>
    tpu.vector_store %arg3[%c0_7, %c0_8], %23 {strides = array<i32>} : memref<1x128xf32, #tpu.memory_space<vmem>>, vector<1x128xf32>,
    return
  }
  func.func @transform_0(%arg0: i32) -> (i32, i32) {
    %c0_i32 = arith.constant 0 : i32
    %c0_i32_0 = arith.constant 0 : i32
    return %c0_i32, %arg0 : i32, i32
  }
  func.func @transform_1(%arg0: i32) -> (i32, i32) {
    %c0_i32 = arith.constant 0 : i32
    %c0_i32_0 = arith.constant 0 : i32
    %c0_i32_1 = arith.constant 0 : i32
    return %c0_i32, %c0_i32_0 : i32, i32
  }
  func.func @transform_2(%arg0: i32) -> (i32, i32) {
    %c0_i32 = arith.constant 0 : i32
    %c0_i32_0 = arith.constant 0 : i32
    return %c0_i32, %arg0 : i32, i32
  }
}

</mosaic_0001>

<llo_original>
// kernel: _forward_jit.1
$region0: #{_forward_jit.1}
  #allocation0 [shape = 'u32[]', space=smem, size = 0x4, offset = 0x4, fixed_abs, tag = 'smem constant byte address 0x4 - core index']
  #allocation1 [shape = 'u32[144,128]{1,0:T(1,128)}', space=vmem, size = 0x12000, scoped, tag = 'internal scratch']
  %s0 = inlined_call_operand.vmem [shape: f32[4,128], index: 0, kind: input, shape index: {}]
  %s1 = inlined_call_operand.vmem [shape: f32[32,128], index: 1, kind: input, shape index: {}]
  %s2 = inlined_call_operand.vmem [shape: f32[1,128], index: 2, kind: output, shape index: {}]
  %s3 = sld [smem:[#allocation0]]
  $region18: #{_forward_jit.1} parent=0
    _
  %s5 = ssub.s32 1, %s3
  %s6 = scalar_select 0, %s5, %s3
  // Predicated region
  $region2: #{_forward_jit.1} parent=0 // pred_check
    _
  $region3: #{_forward_jit.1} parent=0 // pred_check_branch
    %8 = sbr.rel (0) target = $region5
  $region4: #{_forward_jit.1} parent=0 // pred_region
    _
  $region5: #{_forward_jit.1} parent=0 // pred_fallthru
    _
  // Predicated region
  $region6: #{_forward_jit.1} parent=0 // pred_check
    _
  $region7: #{_forward_jit.1} parent=0 // pred_check_branch
    %10 = sbr.rel (0) target = $region9
  $region8: #{_forward_jit.1} parent=0 // pred_region
    _
  $region9: #{_forward_jit.1} parent=0 // pred_fallthru
    _
  %v11 = vld [vmem:[%s1] sm:$0xff]
  %v12 = vld [vmem:[%s1 + $0x8] sm:$0xff]
  %v13 = vld [vmem:[%s1 + $0x10] sm:$0xff]
  %v14 = vld [vmem:[%s1 + $0x18] sm:$0xff]
  %v15 = vld [vmem:[%s0] sm:$0xf]
  %17 = vset.pattern.permute.xlu0 0
  %18 = vperm.xlu0 %17, %v14
  %v19 = vpop.permute.xlu0 %18
  %vm21 = vcmask 31744
  %v23 = vsel %vm21, %v11, 0
  %vm25 = vcmask 1043456
  %v27 = vsel %vm25, %v15, 0
  %29 = vmatprep.subr.mxu0 0.0
  %30 = vmatpush1.msra.mxu0 %v27
  %31 = vmatprep.subr.mxu0 0.0
  %32 = vmatpush1.msra.mxu0 0.0
  %33 = vmatprep.subr.mxu0 0.0
  %34 = vmatpush1.msra.mxu0 0.0
  %35 = vmatprep.subr.mxu0 0.0
  %36 = vmatpush1.msra.mxu0 0.0
  %37 = vmatprep.subr.mxu0 0.0
  %38 = vmatpush1.msra.mxu0 0.0
  %39 = vmatprep.subr.mxu0 0.0
  %40 = vmatpush1.msra.mxu0 0.0
  %41 = vmatprep.subr.mxu0 0.0
  %42 = vmatpush1.msra.mxu0 0.0
  %43 = vmatprep.subr.mxu0 0.0
  %44 = vmatpush1.msra.mxu0 0.0
  %45 = vmatprep.subr.mxu0 0.0
  %46 = vmatpush1.msra.mxu0 0.0
  %47 = vmatprep.subr.mxu0 0.0
  %48 = vmatpush1.msra.mxu0 0.0
  %49 = vmatprep.subr.mxu0 0.0
  %50 = vmatpush1.msra.mxu0 0.0
  %51 = vmatprep.subr.mxu0 0.0
  %52 = vmatpush1.msra.mxu0 0.0
  %53 = vmatprep.subr.mxu0 0.0
  %54 = vmatpush1.msra.mxu0 0.0
  %55 = vmatprep.subr.mxu0 0.0
  %56 = vmatpush1.msra.mxu0 0.0
  %57 = vmatprep.subr.mxu0 0.0
  %58 = vmatpush1.msra.mxu0 0.0
  %59 = vmatprep.subr.mxu0 0.0
  %60 = vmatpush1.msra.mxu0 0.0
  %61 = vmatprep.subr.mxu0 0.0
  %62 = vmatpush1.msra.mxu0 0.0
  %63 = vmatprep.subr.mxu0 0.0
  %64 = vmatpush1.msra.mxu0 0.0
  %65 = vmatprep.subr.mxu0 0.0
  %66 = vmatpush1.msra.mxu0 0.0
  %67 = vmatprep.subr.mxu0 0.0
  %68 = vmatpush1.msra.mxu0 0.0
  %69 = vmatprep.subr.mxu0 0.0
  %70 = vmatpush1.msra.mxu0 0.0
  %71 = vmatprep.subr.mxu0 0.0
  %72 = vmatpush1.msra.mxu0 0.0
  %73 = vmatprep.subr.mxu0 0.0
  %74 = vmatpush1.msra.mxu0 0.0
  %75 = vmatprep.subr.mxu0 0.0
  %76 = vmatpush1.msra.mxu0 0.0
  %77 = vmatprep.subr.mxu0 0.0
  %78 = vmatpush1.msra.mxu0 0.0
  %79 = vmatprep.subr.mxu0 0.0
  %80 = vmatpush1.msra.mxu0 0.0
  %81 = vmatprep.subr.mxu0 0.0
  %82 = vmatpush1.msra.mxu0 0.0
  %83 = vmatprep.subr.mxu0 0.0
  %84 = vmatpush1.msra.mxu0 0.0
  %85 = vmatprep.subr.mxu0 0.0
  %86 = vmatpush1.msra.mxu0 0.0
  %87 = vmatprep.subr.mxu0 0.0
  %88 = vmatpush1.msra.mxu0 0.0
  %89 = vmatprep.subr.mxu0 0.0
  %90 = vmatpush1.msra.mxu0 0.0
  %91 = vmatprep.subr.mxu0 0.0
  %92 = vmatpush1.msra.mxu0 0.0
  %93 = vmatprep.mubr.f32.mxu0 0.0
  %94 = vmatmul.mubr.f32.gmra.mrb[0].mxu0 %v23
  %v95 = vpop.f32.mrb[0].mxu0
  %v96 = vadd.f32 %v19, %v95
  %v97 = vpop.f32.mrb[0].mxu0
  %98 = vdwg.mxu0
  %v99 = vmax.f32 %v96, 0.0
  %100 = vset.pattern.permute.xlu0 1
  %101 = vperm.xlu0 %100, %v14
  %v102 = vpop.permute.xlu0 %101
  %vm104 = vcmask 64512
  %v106 = vsel %vm104, %v12, 0
  %108 = vmatprep.subr.mxu0 0.0
  %109 = vmatpush1.msra.mxu0 %v99
  %110 = vmatprep.subr.mxu0 0.0
  %111 = vmatpush1.msra.mxu0 0.0
  %112 = vmatprep.subr.mxu0 0.0
  %113 = vmatpush1.msra.mxu0 0.0
  %114 = vmatprep.subr.mxu0 0.0
  %115 = vmatpush1.msra.mxu0 0.0
  %116 = vmatprep.subr.mxu0 0.0
  %117 = vmatpush1.msra.mxu0 0.0
  %118 = vmatprep.subr.mxu0 0.0
  %119 = vmatpush1.msra.mxu0 0.0
  %120 = vmatprep.subr.mxu0 0.0
  %121 = vmatpush1.msra.mxu0 0.0
  %122 = vmatprep.subr.mxu0 0.0
  %123 = vmatpush1.msra.mxu0 0.0
  %124 = vmatprep.subr.mxu0 0.0
  %125 = vmatpush1.msra.mxu0 0.0
  %126 = vmatprep.subr.mxu0 0.0
  %127 = vmatpush1.msra.mxu0 0.0
  %128 = vmatprep.subr.mxu0 0.0
  %129 = vmatpush1.msra.mxu0 0.0
  %130 = vmatprep.subr.mxu0 0.0
  %131 = vmatpush1.msra.mxu0 0.0
  %132 = vmatprep.subr.mxu0 0.0
  %133 = vmatpush1.msra.mxu0 0.0
  %134 = vmatprep.subr.mxu0 0.0
  %135 = vmatpush1.msra.mxu0 0.0
  %136 = vmatprep.subr.mxu0 0.0
  %137 = vmatpush1.msra.mxu0 0.0
  %138 = vmatprep.subr.mxu0 0.0
  %139 = vmatpush1.msra.mxu0 0.0
  %140 = vmatprep.subr.mxu0 0.0
  %141 = vmatpush1.msra.mxu0 0.0
  %142 = vmatprep.subr.mxu0 0.0
  %143 = vmatpush1.msra.mxu0 0.0
  %144 = vmatprep.subr.mxu0 0.0
  %145 = vmatpush1.msra.mxu0 0.0
  %146 = vmatprep.subr.mxu0 0.0
  %147 = vmatpush1.msra.mxu0 0.0
  %148 = vmatprep.subr.mxu0 0.0
  %149 = vmatpush1.msra.mxu0 0.0
  %150 = vmatprep.subr.mxu0 0.0
  %151 = vmatpush1.msra.mxu0 0.0
  %152 = vmatprep.subr.mxu0 0.0
  %153 = vmatpush1.msra.mxu0 0.0
  %154 = vmatprep.subr.mxu0 0.0
  %155 = vmatpush1.msra.mxu0 0.0
  %156 = vmatprep.subr.mxu0 0.0
  %157 = vmatpush1.msra.mxu0 0.0
  %158 = vmatprep.subr.mxu0 0.0
  %159 = vmatpush1.msra.mxu0 0.0
  %160 = vmatprep.subr.mxu0 0.0
  %161 = vmatpush1.msra.mxu0 0.0
  %162 = vmatprep.subr.mxu0 0.0
  %163 = vmatpush1.msra.mxu0 0.0
  %164 = vmatprep.subr.mxu0 0.0
  %165 = vmatpush1.msra.mxu0 0.0
  %166 = vmatprep.subr.mxu0 0.0
  %167 = vmatpush1.msra.mxu0 0.0
  %168 = vmatprep.subr.mxu0 0.0
  %169 = vmatpush1.msra.mxu0 0.0
  %170 = vmatprep.subr.mxu0 0.0
  %171 = vmatpush1.msra.mxu0 0.0
  %172 = vmatprep.mubr.f32.mxu0 0.0
  %173 = vmatmul.mubr.f32.gmra.mrb[0].mxu0 %v106
  %v174 = vpop.f32.mrb[0].mxu0
  %v175 = vadd.f32 %v102, %v174
  %v176 = vpop.f32.mrb[0].mxu0
  %177 = vdwg.mxu0
  %v178 = vmax.f32 %v175, 0.0
  %180 = vset.pattern.permute.xlu0 0
  %181 = vperm.xlu0 %180, %v13
  %v182 = vpop.permute.xlu0 %181
  %v184 = vmul.f32 %v178, %v182
  %v185 = vrot.slane %v184, 4
  %v186 = vadd.f32 %v184, %v185
  %v187 = vrot.slane %v186, 2
  %v188 = vadd.f32 %v186, %v187
  %v189 = vrot.slane %v188, 1
  %v190 = vadd.f32 %v188, %v189
  %191 = vset.pattern.permute.xlu0 2
  %192 = vperm.xlu0 %191, %v14
  %v193 = vpop.permute.xlu0 %192
  %v195 = vadd.f32 %v190, %v193
  %196 = vst [vmem:[%s2] sm:$0x1] %v195
  // Predicated region
  $region10: #{_forward_jit.1} parent=0 // pred_check
    _
  $region11: #{_forward_jit.1} parent=0 // pred_check_branch
    %198 = sbr.rel (0) target = $region13
  $region12: #{_forward_jit.1} parent=0 // pred_region
    _
  $region13: #{_forward_jit.1} parent=0 // pred_fallthru
    _
  // Predicated region
  $region14: #{_forward_jit.1} parent=0 // pred_check
    _
  $region15: #{_forward_jit.1} parent=0 // pred_check_branch
    %200 = sbr.rel (0) target = $region17
  $region16: #{_forward_jit.1} parent=0 // pred_region
    _
  $region17: #{_forward_jit.1} parent=0 // pred_fallthru
    _

</llo_original>
